<compile_context>
chip_gen: v5e
topology: v5e:2x2
jax: 0.10.0
libtpu: 0.0.40
codegen_flags: <defaults>
</compile_context>

<pallas_src>
import functools

import jax
import jax.numpy as jnp
from jax.experimental import pallas as pl
from jax.experimental.pallas import tpu as pltpu


def _round_up(x, m):
    return (x + m - 1) // m * m


def _repvgg_kernel(xm_ref, xh0_ref, xh1_ref, w_ref, b_ref, o_ref, *, wp):
    """One (batch, H-tile, Cout-tile) grid step of the fused RepVGG conv.

    xm_ref : (1, TILE_H*Wp, Cin)  row-flattened padded rows [h*T, h*T+T)
    xh0_ref: (1, Wp, Cin)         halo padded row  h*T+T
    xh1_ref: (1, Wp, Cin)         halo padded row  h*T+T+1
    w_ref  : (9, Cin, TILE_CO)    BN-fused, 1x1-folded 3x3 taps (k = dy*3+dx)
    b_ref  : (1, TILE_CO)         fused bias (f32)
    o_ref  : (1, TILE_H*Wp, TILE_CO)
    """
    m = o_ref.shape[1]          # TILE_H * Wp flattened output rows
    cin = xm_ref.shape[2]
    cout = o_ref.shape[2]

    # Assemble the (TILE_H+2)*Wp row window (all pieces are multiples of 8
    # sublanes, so this is a tile-aligned block concat).  The 8-row zero tail
    # keeps the dx>0 shifted slices in bounds; those rows only ever feed the
    # padding columns that the wrapper slices away.
    tail = jnp.zeros((8, cin), xm_ref.dtype)
    xw = jnp.concatenate([xm_ref[0], xh0_ref[0], xh1_ref[0], tail], axis=0)

    # 3x3 conv as 9 shifted matmuls over the flattened (row, col) axis:
    #   out[r*Wp + c] += x[(r+dy)*Wp + (c+dx)] @ w[dy*3+dx]
    # Sublane mis-alignment from dx is paid once per dx (outer slice); the
    # inner dy*Wp offsets are multiples of 8 so those slices stay aligned.
    acc = jnp.zeros((m, cout), jnp.float32)
    for dx in range(3):
        xs = xw[dx:dx + m + 2 * wp]
        for dy in range(3):
            acc = acc + jnp.dot(xs[dy * wp:dy * wp + m],
                                w_ref[dy * 3 + dx],
                                preferred_element_type=jnp.float32)

    o_ref[0] = jnp.maximum(acc + b_ref[...], 0.0).astype(o_ref.dtype)


def repvgg_forward_nhwc(x_nhwc, w3, b3, w1, b1, *,
                        compute_dtype=jnp.bfloat16, tile_h=None, tile_co=None):
    """x_nhwc: (N, H, W, Cin). Weights are BN-fused HWIO. Returns (N, H, W, Cout)."""
    N, H, W, Cin = x_nhwc.shape
    Cout = w3.shape[-1]
    out_dtype = x_nhwc.dtype
    csize = jnp.dtype(compute_dtype).itemsize
    osize = jnp.dtype(out_dtype).itemsize

    # --- RepVGG re-parameterization (glue): fold the BN'd 1x1 branch into the
    #     3x3 center tap and pre-sum biases -> single 3x3 conv + bias + relu.
    w = w3.astype(jnp.float32).at[1, 1].add(w1[0, 0].astype(jnp.float32))
    b = (b3.astype(jnp.float32) + b1.astype(jnp.float32)).reshape(1, Cout)
    w9 = w.reshape(9, Cin, Cout).astype(compute_dtype)

    # --- geometry: left/top pad = 1; W padded up so every padded row is a
    # whole number of 8-sublane tiles (row-major flatten is then free and the
    # dy*Wp tap offsets stay sublane-aligned).
    wp = _round_up(W + 2, 8)
    hp = H + 2

    # --- Cout tiling: keep the fused weights resident unless they are large.
    if tile_co is None:
        tile_co = Cout
        for cand in (256, 128):
            if Cout > cand and Cout % cand == 0 and 9 * Cin * Cout * csize > (8 << 20):
                tile_co = cand
                break
    assert Cout % tile_co == 0
    n_co = Cout // tile_co

    # --- H tiling: largest divisor of H whose per-step working set fits a
    # comfortable VMEM budget (blocks are double-buffered by the pipeline).
    if tile_h is None:
        budget = 10 << 20
        tile_h = 1
        for cand in range(1, min(H, 32) + 1):
            if H % cand:
                continue
            tw_c = cand * wp
            need = tw_c * Cin * csize + tw_c * tile_co * (osize + 4)
            if need <= budget:
                tile_h = cand
    assert H % tile_h == 0, "tile_h must divide H"
    n_h = H // tile_h
    tw = tile_h * wp                      # flattened rows per H tile

    # --- padded + row-flattened input (one fused XLA pad/cast/reshape pass).
    xpad = jnp.pad(x_nhwc.astype(compute_dtype),
                   ((0, 0), (1, 1), (1, wp - W - 1), (0, 0)))
    x_flat = xpad.reshape(N, hp * wp, Cin)

    grid = (N, n_h, n_co)
    in_specs = [
        # main rows of the tile: padded rows [h*T, h*T+T)
        pl.BlockSpec((1, tw, Cin), lambda n, h, co: (n, h, 0)),
        # single-row halos below the tile: padded rows h*T+T and h*T+T+1
        # (block size Wp, so the indices are exact for any tile_h).
        pl.BlockSpec((1, wp, Cin), lambda n, h, co: (n, (h + 1) * tile_h, 0)),
        pl.BlockSpec((1, wp, Cin), lambda n, h, co: (n, (h + 1) * tile_h + 1, 0)),
        pl.BlockSpec((9, Cin, tile_co), lambda n, h, co: (0, 0, co)),
        pl.BlockSpec((1, tile_co), lambda n, h, co: (0, co)),
    ]
    out_specs = pl.BlockSpec((1, tw, tile_co), lambda n, h, co: (n, h, co))

    # --- explicit VMEM budget from the chosen block sizes (double-buffered
    # inputs/outputs + in-kernel window/shift/accumulator temps), capped below
    # v7x's 64MiB physical VMEM.
    block_bytes = ((tw + 2 * wp) * Cin * csize
                   + 9 * Cin * tile_co * csize + tile_co * 4
                   + tw * tile_co * osize)
    scratch_bytes = 4 * (tw + 2 * wp + 8) * Cin * csize + 2 * tw * tile_co * 4
    vmem_limit = int(min(max(2 * block_bytes + scratch_bytes + (4 << 20),
                             32 << 20), 60 << 20))

    out_flat = pl.pallas_call(
        functools.partial(_repvgg_kernel, wp=wp),
        out_shape=jax.ShapeDtypeStruct((N, H * wp, Cout), out_dtype),
        grid=grid,
        in_specs=in_specs,
        out_specs=out_specs,
        compiler_params=pltpu.CompilerParams(
            dimension_semantics=("parallel", "parallel", "parallel"),
            vmem_limit_bytes=vmem_limit),
    )(x_flat, x_flat, x_flat, w9, b)

    # Un-flatten and drop the W padding columns (fuses with the caller's
    # transpose back to NCHW).
    return out_flat.reshape(N, H, wp, Cout)[:, :, :W, :]


def repvgg_forward(x_nchw, w3, b3, w1, b1, **kw):
    """PyTorch-layout entry point: x (N, Cin, H, W) -> (N, Cout, H, W).

    The NCHW->NHWC transpose, compute-dtype cast and zero pad fuse into one
    XLA pass.
    """
    x_nhwc = jnp.transpose(x_nchw, (0, 2, 3, 1))
    y = repvgg_forward_nhwc(x_nhwc, w3, b3, w1, b1, **kw)
    return jnp.transpose(y, (0, 3, 1, 2)).astype(x_nchw.dtype)


def make_params(key, ch_in, ch_out, eps=1e-5):
    """Deterministic synthetic params; BN (eval mode) folded into conv scale/bias."""
    ks = jax.random.split(key, 10)
    w3_raw = jax.random.normal(ks[0], (3, 3, ch_in, ch_out), jnp.float32) * 0.1
    w1_raw = jax.random.normal(ks[1], (1, 1, ch_in, ch_out), jnp.float32) * 0.1
    g3 = 1.0 + 0.1 * jax.random.normal(ks[2], (ch_out,), jnp.float32)
    be3 = 0.1 * jax.random.normal(ks[3], (ch_out,), jnp.float32)
    rm3 = 0.1 * jax.random.normal(ks[4], (ch_out,), jnp.float32)
    rv3 = jnp.abs(jax.random.normal(ks[5], (ch_out,), jnp.float32)) + 0.5
    g1 = 1.0 + 0.1 * jax.random.normal(ks[6], (ch_out,), jnp.float32)
    be1 = 0.1 * jax.random.normal(ks[7], (ch_out,), jnp.float32)
    rm1 = 0.1 * jax.random.normal(ks[8], (ch_out,), jnp.float32)
    rv1 = jnp.abs(jax.random.normal(ks[9], (ch_out,), jnp.float32)) + 0.5
    s3 = g3 / jnp.sqrt(rv3 + eps)
    s1 = g1 / jnp.sqrt(rv1 + eps)
    w3 = w3_raw * s3[None, None, None, :]
    b3 = be3 - rm3 * s3
    w1 = w1_raw * s1[None, None, None, :]
    b1 = be1 - rm1 * s1
    return w3, b3, w1, b1


def reference_forward(x_nchw, w3, b3, w1, b1):
    """Pure-JAX reference (lax conv, two branches) for the correctness check."""
    x = jnp.transpose(x_nchw, (0, 2, 3, 1))
    dn = jax.lax.conv_dimension_numbers(x.shape, w3.shape, ("NHWC", "HWIO", "NHWC"))
    y3 = jax.lax.conv_general_dilated(x, w3, (1, 1), ((1, 1), (1, 1)),
                                      dimension_numbers=dn) + b3[None, None, None, :]
    y1 = jax.lax.conv_general_dilated(x, w1, (1, 1), ((0, 0), (0, 0)),
                                      dimension_numbers=dn) + b1[None, None, None, :]
    y = jnp.maximum(y3 + y1, 0.0)
    return jnp.transpose(y, (0, 3, 1, 2))


if __name__ == "__main__":
    key = jax.random.PRNGKey(0)
    kx, kp = jax.random.split(key)

    N, CH_IN, CH_OUT, H, W = 2, 4, 4, 16, 16
    x = jax.random.normal(kx, (N, CH_IN, H, W), jnp.float32)  # NCHW like PyTorch
    w3, b3, w1, b1 = make_params(kp, CH_IN, CH_OUT)
    ref = reference_forward(x, w3, b3, w1, b1)

    # f32 operands, explicit small H-tile: exercises the cross-tile halo path
    # (4 H-tiles) and gives tight agreement with the lax reference.
    out_f32 = jax.block_until_ready(
        repvgg_forward(x, w3, b3, w1, b1, compute_dtype=jnp.float32, tile_h=4))
    assert out_f32.shape == (N, CH_OUT, H, W)
    assert jnp.allclose(out_f32, ref, atol=1e-4, rtol=1e-4)

    # bf16 operands + f32 accumulation, auto tile selection: the production
    # configuration.
    out_bf16 = jax.block_until_ready(
        repvgg_forward(x, w3, b3, w1, b1, compute_dtype=jnp.bfloat16))
    assert out_bf16.shape == (N, CH_OUT, H, W)
    assert jnp.allclose(out_bf16, ref, atol=5e-2, rtol=5e-2)

    print("KERNEL_OK")
</pallas_src>

<mosaic_0001>
module attributes {stable_mosaic.version = 11 : i64} {
  func.func @_repvgg_kernel(%arg0: i32, %arg1: i32, %arg2: i32, %arg3: memref<1x96x4xf32, #tpu.memory_space<vmem>>, %arg4: memref<1x24x4xf32, #tpu.memory_space<vmem>>, %arg5: memref<1x24x4xf32, #tpu.memory_space<vmem>>, %arg6: memref<9x4x4xf32, #tpu.memory_space<vmem>>, %arg7: memref<1x4xf32, #tpu.memory_space<vmem>>, %arg8: memref<1x96x4xf32, #tpu.memory_space<vmem>>) attributes {dimension_semantics = [#tpu.dimension_semantics<parallel>, #tpu.dimension_semantics<parallel>, #tpu.dimension_semantics<parallel>], iteration_bounds = array<i64: 2, 4, 1>, scalar_prefetch = 0 : i64, scratch_operands = 0 : i64, tpu.core_type = #tpu.core_type<tc>, window_params = [{transform_indices = @transform_0, window_bounds = array<i64: 1, 96, 4>}, {transform_indices = @transform_1, window_bounds = array<i64: 1, 24, 4>}, {transform_indices = @transform_2, window_bounds = array<i64: 1, 24, 4>}, {transform_indices = @transform_3, window_bounds = array<i64: 9, 4, 4>}, {transform_indices = @transform_4, window_bounds = array<i64: 1, 4>}, {transform_indices = @transform_5, window_bounds = array<i64: 1, 96, 4>}]} {
    %cst = arith.constant 0.000000e+00 : f32
    %0 = vector.broadcast %cst : f32 to vector<8x4xf32>
    %c0 = arith.constant 0 : index
    %c0_0 = arith.constant 0 : index
    %c0_1 = arith.constant 0 : index
    %1 = vector.load %arg3[%c0, %c0_0, %c0_1] : memref<1x96x4xf32, #tpu.memory_space<vmem>>, vector<1x96x4xf32>
    %2 = vector.shape_cast %1 : vector<1x96x4xf32> to vector<96x4xf32>
    %c0_2 = arith.constant 0 : index
    %c0_3 = arith.constant 0 : index
    %c0_4 = arith.constant 0 : index
    %3 = vector.load %arg4[%c0_2, %c0_3, %c0_4] : memref<1x24x4xf32, #tpu.memory_space<vmem>>, vector<1x24x4xf32>
    %4 = vector.shape_cast %3 : vector<1x24x4xf32> to vector<24x4xf32>
    %c0_5 = arith.constant 0 : index
    %c0_6 = arith.constant 0 : index
    %c0_7 = arith.constant 0 : index
    %5 = vector.load %arg5[%c0_5, %c0_6, %c0_7] : memref<1x24x4xf32, #tpu.memory_space<vmem>>, vector<1x24x4xf32>
    %6 = vector.shape_cast %5 : vector<1x24x4xf32> to vector<24x4xf32>
    %7 = tpu.concatenate %2, %4, %6, %0 in 0 : vector<96x4xf32>, vector<24x4xf32>, vector<24x4xf32>, vector<8x4xf32> -> vector<152x4xf32>
    %cst_8 = arith.constant 0.000000e+00 : f32
    %8 = vector.broadcast %cst_8 : f32 to vector<96x4xf32>
    %9 = vector.extract_strided_slice %7 {offsets = [0, 0], sizes = [144, 4], strides = [1, 1]} : vector<152x4xf32> to vector<144x4xf32>
    %10 = vector.extract_strided_slice %9 {offsets = [0, 0], sizes = [96, 4], strides = [1, 1]} : vector<144x4xf32> to vector<96x4xf32>
    %c0_9 = arith.constant 0 : index
    %c0_10 = arith.constant 0 : index
    %c0_11 = arith.constant 0 : index
    %11 = vector.load %arg6[%c0_9, %c0_10, %c0_11] : memref<9x4x4xf32, #tpu.memory_space<vmem>>, vector<1x4x4xf32>
    %12 = vector.shape_cast %11 : vector<1x4x4xf32> to vector<4x4xf32>
    %cst_12 = arith.constant dense<0.000000e+00> : vector<96x4xf32>
    %13 = tpu.matmul %10, %12, %cst_12 {dimension_numbers = #tpu.dot_dimension_numbers<[1], [0], [0], [1], [0, 0, 1, 1], [], []>} : vector<96x4xf32>, vector<4x4xf32>, vector<96x4xf32> -> vector<96x4xf32>
    %14 = arith.addf %8, %13 : vector<96x4xf32>
    %15 = vector.extract_strided_slice %9 {offsets = [24, 0], sizes = [96, 4], strides = [1, 1]} : vector<144x4xf32> to vector<96x4xf32>
    %c3 = arith.constant 3 : index
    %c0_13 = arith.constant 0 : index
    %c0_14 = arith.constant 0 : index
    %16 = vector.load %arg6[%c3, %c0_13, %c0_14] : memref<9x4x4xf32, #tpu.memory_space<vmem>>, vector<1x4x4xf32>
    %17 = vector.shape_cast %16 : vector<1x4x4xf32> to vector<4x4xf32>
    %cst_15 = arith.constant dense<0.000000e+00> : vector<96x4xf32>
    %18 = tpu.matmul %15, %17, %cst_15 {dimension_numbers = #tpu.dot_dimension_numbers<[1], [0], [0], [1], [0, 0, 1, 1], [], []>} : vector<96x4xf32>, vector<4x4xf32>, vector<96x4xf32> -> vector<96x4xf32>
    %19 = arith.addf %14, %18 : vector<96x4xf32>
    %20 = vector.extract_strided_slice %9 {offsets = [48, 0], sizes = [96, 4], strides = [1, 1]} : vector<144x4xf32> to vector<96x4xf32>
    %c6 = arith.constant 6 : index
    %c0_16 = arith.constant 0 : index
    %c0_17 = arith.constant 0 : index
    %21 = vector.load %arg6[%c6, %c0_16, %c0_17] : memref<9x4x4xf32, #tpu.memory_space<vmem>>, vector<1x4x4xf32>
    %22 = vector.shape_cast %21 : vector<1x4x4xf32> to vector<4x4xf32>
    %cst_18 = arith.constant dense<0.000000e+00> : vector<96x4xf32>
    %23 = tpu.matmul %20, %22, %cst_18 {dimension_numbers = #tpu.dot_dimension_numbers<[1], [0], [0], [1], [0, 0, 1, 1], [], []>} : vector<96x4xf32>, vector<4x4xf32>, vector<96x4xf32> -> vector<96x4xf32>
    %24 = arith.addf %19, %23 : vector<96x4xf32>
    %25 = vector.extract_strided_slice %7 {offsets = [1, 0], sizes = [144, 4], strides = [1, 1]} : vector<152x4xf32> to vector<144x4xf32>
    %26 = vector.extract_strided_slice %25 {offsets = [0, 0], sizes = [96, 4], strides = [1, 1]} : vector<144x4xf32> to vector<96x4xf32>
    %c1 = arith.constant 1 : index
    %c0_19 = arith.constant 0 : index
    %c0_20 = arith.constant 0 : index
    %27 = vector.load %arg6[%c1, %c0_19, %c0_20] : memref<9x4x4xf32, #tpu.memory_space<vmem>>, vector<1x4x4xf32>
    %28 = vector.shape_cast %27 : vector<1x4x4xf32> to vector<4x4xf32>
    %cst_21 = arith.constant dense<0.000000e+00> : vector<96x4xf32>
    %29 = tpu.matmul %26, %28, %cst_21 {dimension_numbers = #tpu.dot_dimension_numbers<[1], [0], [0], [1], [0, 0, 1, 1], [], []>} : vector<96x4xf32>, vector<4x4xf32>, vector<96x4xf32> -> vector<96x4xf32>
    %30 = arith.addf %24, %29 : vector<96x4xf32>
    %31 = vector.extract_strided_slice %25 {offsets = [24, 0], sizes = [96, 4], strides = [1, 1]} : vector<144x4xf32> to vector<96x4xf32>
    %c4 = arith.constant 4 : index
    %c0_22 = arith.constant 0 : index
    %c0_23 = arith.constant 0 : index
    %32 = vector.load %arg6[%c4, %c0_22, %c0_23] : memref<9x4x4xf32, #tpu.memory_space<vmem>>, vector<1x4x4xf32>
    %33 = vector.shape_cast %32 : vector<1x4x4xf32> to vector<4x4xf32>
    %cst_24 = arith.constant dense<0.000000e+00> : vector<96x4xf32>
    %34 = tpu.matmul %31, %33, %cst_24 {dimension_numbers = #tpu.dot_dimension_numbers<[1], [0], [0], [1], [0, 0, 1, 1], [], []>} : vector<96x4xf32>, vector<4x4xf32>, vector<96x4xf32> -> vector<96x4xf32>
    %35 = arith.addf %30, %34 : vector<96x4xf32>
    %36 = vector.extract_strided_slice %25 {offsets = [48, 0], sizes = [96, 4], strides = [1, 1]} : vector<144x4xf32> to vector<96x4xf32>
    %c7 = arith.constant 7 : index
    %c0_25 = arith.constant 0 : index
    %c0_26 = arith.constant 0 : index
    %37 = vector.load %arg6[%c7, %c0_25, %c0_26] : memref<9x4x4xf32, #tpu.memory_space<vmem>>, vector<1x4x4xf32>
    %38 = vector.shape_cast %37 : vector<1x4x4xf32> to vector<4x4xf32>
    %cst_27 = arith.constant dense<0.000000e+00> : vector<96x4xf32>
    %39 = tpu.matmul %36, %38, %cst_27 {dimension_numbers = #tpu.dot_dimension_numbers<[1], [0], [0], [1], [0, 0, 1, 1], [], []>} : vector<96x4xf32>, vector<4x4xf32>, vector<96x4xf32> -> vector<96x4xf32>
    %40 = arith.addf %35, %39 : vector<96x4xf32>
    %41 = vector.extract_strided_slice %7 {offsets = [2, 0], sizes = [144, 4], strides = [1, 1]} : vector<152x4xf32> to vector<144x4xf32>
    %42 = vector.extract_strided_slice %41 {offsets = [0, 0], sizes = [96, 4], strides = [1, 1]} : vector<144x4xf32> to vector<96x4xf32>
    %c2 = arith.constant 2 : index
    %c0_28 = arith.constant 0 : index
    %c0_29 = arith.constant 0 : index
    %43 = vector.load %arg6[%c2, %c0_28, %c0_29] : memref<9x4x4xf32, #tpu.memory_space<vmem>>, vector<1x4x4xf32>
    %44 = vector.shape_cast %43 : vector<1x4x4xf32> to vector<4x4xf32>
    %cst_30 = arith.constant dense<0.000000e+00> : vector<96x4xf32>
    %45 = tpu.matmul %42, %44, %cst_30 {dimension_numbers = #tpu.dot_dimension_numbers<[1], [0], [0], [1], [0, 0, 1, 1], [], []>} : vector<96x4xf32>, vector<4x4xf32>, vector<96x4xf32> -> vector<96x4xf32>
    %46 = arith.addf %40, %45 : vector<96x4xf32>
    %47 = vector.extract_strided_slice %41 {offsets = [24, 0], sizes = [96, 4], strides = [1, 1]} : vector<144x4xf32> to vector<96x4xf32>
    %c5 = arith.constant 5 : index
    %c0_31 = arith.constant 0 : index
    %c0_32 = arith.constant 0 : index
    %48 = vector.load %arg6[%c5, %c0_31, %c0_32] : memref<9x4x4xf32, #tpu.memory_space<vmem>>, vector<1x4x4xf32>
    %49 = vector.shape_cast %48 : vector<1x4x4xf32> to vector<4x4xf32>
    %cst_33 = arith.constant dense<0.000000e+00> : vector<96x4xf32>
    %50 = tpu.matmul %47, %49, %cst_33 {dimension_numbers = #tpu.dot_dimension_numbers<[1], [0], [0], [1], [0, 0, 1, 1], [], []>} : vector<96x4xf32>, vector<4x4xf32>, vector<96x4xf32> -> vector<96x4xf32>
    %51 = arith.addf %46, %50 : vector<96x4xf32>
    %52 = vector.extract_strided_slice %41 {offsets = [48, 0], sizes = [96, 4], strides = [1, 1]} : vector<144x4xf32> to vector<96x4xf32>
    %c8 = arith.constant 8 : index
    %c0_34 = arith.constant 0 : index
    %c0_35 = arith.constant 0 : index
    %53 = vector.load %arg6[%c8, %c0_34, %c0_35] : memref<9x4x4xf32, #tpu.memory_space<vmem>>, vector<1x4x4xf32>
    %54 = vector.shape_cast %53 : vector<1x4x4xf32> to vector<4x4xf32>
    %cst_36 = arith.constant dense<0.000000e+00> : vector<96x4xf32>
    %55 = tpu.matmul %52, %54, %cst_36 {dimension_numbers = #tpu.dot_dimension_numbers<[1], [0], [0], [1], [0, 0, 1, 1], [], []>} : vector<96x4xf32>, vector<4x4xf32>, vector<96x4xf32> -> vector<96x4xf32>
    %56 = arith.addf %51, %55 : vector<96x4xf32>
    %c0_37 = arith.constant 0 : index
    %c0_38 = arith.constant 0 : index
    %57 = vector.load %arg7[%c0_37, %c0_38] : memref<1x4xf32, #tpu.memory_space<vmem>>, vector<1x4xf32>
    %58 = vector.broadcast %57 : vector<1x4xf32> to vector<96x4xf32>
    %59 = arith.addf %56, %58 : vector<96x4xf32>
    %cst_39 = arith.constant 0.000000e+00 : f32
    %60 = vector.broadcast %cst_39 : f32 to vector<96x4xf32>
    %61 = arith.maximumf %59, %60 : vector<96x4xf32>
    %c0_40 = arith.constant 0 : index
    %c0_41 = arith.constant 0 : index
    %c0_42 = arith.constant 0 : index
    %62 = vector.load %arg8[%c0_40, %c0_41, %c0_42] : memref<1x96x4xf32, #tpu.memory_space<vmem>>, vector<1x96x4xf32>
    %63 = vector.shape_cast %62 : vector<1x96x4xf32> to vector<96x4xf32>
    %64 = vector.shape_cast %61 : vector<96x4xf32> to vector<1x96x4xf32>
    tpu.vector_store %arg8[%c0_40, %c0_41, %c0_42], %64 {strides = array<i32>} : memref<1x96x4xf32, #tpu.memory_space<vmem>>, vector<1x96x4xf32>,
    return
  }
  func.func @transform_0(%arg0: i32, %arg1: i32, %arg2: i32) -> (i32, i32, i32) {
    %c0_i32 = arith.constant 0 : i32
    %c0_i32_0 = arith.constant 0 : i32
    return %arg0, %arg1, %c0_i32 : i32, i32, i32
  }
  func.func @transform_1(%arg0: i32, %arg1: i32, %arg2: i32) -> (i32, i32, i32) {
    %c1_i32 = arith.constant 1 : i32
    %0 = arith.addi %arg1, %c1_i32 : i32
    %c4_i32 = arith.constant 4 : i32
    %1 = arith.muli %0, %c4_i32 : i32
    %c0_i32 = arith.constant 0 : i32
    %c0_i32_0 = arith.constant 0 : i32
    return %arg0, %1, %c0_i32 : i32, i32, i32
  }
  func.func @transform_2(%arg0: i32, %arg1: i32, %arg2: i32) -> (i32, i32, i32) {
    %c1_i32 = arith.constant 1 : i32
    %0 = arith.addi %arg1, %c1_i32 : i32
    %c4_i32 = arith.constant 4 : i32
    %1 = arith.muli %0, %c4_i32 : i32
    %c1_i32_0 = arith.constant 1 : i32
    %2 = arith.addi %1, %c1_i32_0 : i32
    %c0_i32 = arith.constant 0 : i32
    %c0_i32_1 = arith.constant 0 : i32
    return %arg0, %2, %c0_i32 : i32, i32, i32
  }
  func.func @transform_3(%arg0: i32, %arg1: i32, %arg2: i32) -> (i32, i32, i32) {
    %c0_i32 = arith.constant 0 : i32
    %c0_i32_0 = arith.constant 0 : i32
    %c0_i32_1 = arith.constant 0 : i32
    return %c0_i32, %c0_i32_0, %arg2 : i32, i32, i32
  }
  func.func @transform_4(%arg0: i32, %arg1: i32, %arg2: i32) -> (i32, i32) {
    %c0_i32 = arith.constant 0 : i32
    %c0_i32_0 = arith.constant 0 : i32
    return %c0_i32, %arg2 : i32, i32
  }
  func.func @transform_5(%arg0: i32, %arg1: i32, %arg2: i32) -> (i32, i32, i32) {
    %c0_i32 = arith.constant 0 : i32
    return %arg0, %arg1, %arg2 : i32, i32, i32
  }
}

</mosaic_0001>

<llo_original>
// kernel: tpu_custom_call.1
$region0: #{tpu_custom_call.1}
  #allocation0 [shape = 'u32[]', space=smem, size = 0x4, offset = 0x4, fixed_abs, tag = 'smem constant byte address 0x4 - core index']
  #allocation1 [shape = 'u32[72,128]{1,0:T(1,128)}', space=vmem, size = 0x9000, scoped, tag = 'internal scratch']
  %s0 = inlined_call_operand.vmem [shape: f32[2,432,4], index: 0, kind: input, shape index: {}]
  %s1 = inlined_call_operand.vmem [shape: f32[2,432,4], index: 1, kind: input, shape index: {}]
  %s2 = inlined_call_operand.vmem [shape: f32[2,432,4], index: 2, kind: input, shape index: {}]
  %s3 = inlined_call_operand.vmem [shape: f32[9,4,4], index: 3, kind: input, shape index: {}]
  %s4 = inlined_call_operand.vmem [shape: f32[1,4], index: 4, kind: input, shape index: {}]
  %s5 = inlined_call_operand.vmem [shape: f32[2,384,4], index: 5, kind: output, shape index: {}]
  %s6 = sld [smem:[#allocation0]]
  $region53: #{tpu_custom_call.1} parent=0
    _
  %s8 = ssub.s32 1, %s6
  %s9 = scalar_select 0, %s8, %s6
  loop: start=0, step=1, limit=10
  $region2: #{tpu_custom_call.1} parent=0 // loop_pre_header
    _
  $region3: #{tpu_custom_call.1} parent=0 // loop_header
    %s11 = sphi 0, %s15
    %p12 = scmp.ge.s32.totalorder %s11, 10
    %s18 = sphi 0, %s37
    %s19 = sphi 0, %s33
    %s20 = sphi 0, %s29
    %s21 = sphi 0, %s18
    %s22 = sphi 0, %s19
    %s23 = sphi 0, %s20
    %s24 = sphi 0, %s21
    %s25 = sphi 0, %s22
    %s26 = sphi 0, %s23
    %s42 = sphi 0, %s44
    %s45 = sphi 0, %s42
    %s46 = sphi 0, %s45
    %s62 = sphi 0, %s46
    %s74 = sphi 0, %s76
    %s77 = sphi 0, %s74
    %s78 = sphi 0, %s77
    %s94 = sphi 0, %s78
    %s108 = sphi 0, %s110
    %s111 = sphi 0, %s108
    %s112 = sphi 0, %s111
    %s128 = sphi 0, %s112
    %s134 = sphi 0, %s136
    %s137 = sphi 0, %s134
    %s138 = sphi 0, %s137
    %s154 = sphi 0, %s138
    %s160 = sphi 0, %s162
    %s163 = sphi 0, %s160
    %s164 = sphi 0, %s163
    %s180 = sphi 0, %s164
    %s190 = sphi 0, %s192
    %s193 = sphi 0, %s190
    %s194 = sphi 0, %s193
    %s210 = sphi 0, %s194
  $region4: #{tpu_custom_call.1} parent=0 // loop_header_branch
    %14 = sbr.rel (%p12) target = $region8
  $region5: #{tpu_custom_call.1} parent=0 // loop_body
    %s16 = ssub.s32 %s11, 1
    %s17 = ssub.s32 %s11, 2
    %s27 = sadd.s32 1, %s20
    %p28 = scmp.ge.s32.totalorder %s27, 1
    %s29 = scalar_select %p28, 0, %s27
    %s30 = sadd.s32 1, %s19
    %s31 = scalar_select %p28, %s30, %s19
    %p32 = scmp.ge.s32.totalorder %s31, 4
    %s33 = scalar_select %p32, 0, %s31
    %s34 = sadd.s32 1, %s18
    %s35 = scalar_select %p32, %s34, %s18
    %p36 = scmp.ge.s32.totalorder %s35, 2
    %s37 = scalar_select %p36, 0, %s35
    %s38 = ssub.s32 %s18, %s37
    %s39 = ssub.s32 %s19, %s33
    %s40 = sor.u32 %s38, %s39
    %p41 = scmp.eq.s32.totalorder %s40, 0
    %s43 = sadd.s32 %s42, 1
    %s44 = scalar_select %p41, %s42, %s43
    %p47 = pneg %p41
    %p48 = scmp.eq.s32.totalorder %s11, 7
    %p49 = por %p47, %p48
    %p50 = scmp.ne.s32.totalorder %s42, %s45
    %p51 = scmp.eq.s32.totalorder %s11, 0
    %p52 = por %p50, %p51
    %p53 = scmp.ne.s32.totalorder %s42, %s45
    %p54 = scmp.eq.s32.totalorder %s16, 7
    %p55 = por %p53, %p54
    %p56 = scmp.ne.s32.totalorder %s45, %s46
    %p57 = scmp.eq.s32.totalorder %s16, 0
    %p58 = por %p56, %p57
    %p59 = scmp.ne.s32.totalorder %s45, %s46
    %p60 = scmp.eq.s32.totalorder %s17, 7
    %p61 = por %p59, %p60
    %p63 = scmp.ne.s32.totalorder %s46, %s62
    %p64 = scmp.eq.s32.totalorder %s17, 0
    %p65 = por %p63, %p64
    %s66 = sadd.s32 %s19, 1
    %s67 = smul.u32 %s66, 4
    %s68 = sadd.s32 %s33, 1
    %s69 = smul.u32 %s68, 4
    %s70 = ssub.s32 %s18, %s37
    %s71 = ssub.s32 %s67, %s69
    %s72 = sor.u32 %s70, %s71
    %p73 = scmp.eq.s32.totalorder %s72, 0
    %s75 = sadd.s32 %s74, 1
    %s76 = scalar_select %p73, %s74, %s75
    %p79 = pneg %p73
    %p80 = scmp.eq.s32.totalorder %s11, 7
    %p81 = por %p79, %p80
    %p82 = scmp.ne.s32.totalorder %s74, %s77
    %p83 = scmp.eq.s32.totalorder %s11, 0
    %p84 = por %p82, %p83
    %p85 = scmp.ne.s32.totalorder %s74, %s77
    %p86 = scmp.eq.s32.totalorder %s16, 7
    %p87 = por %p85, %p86
    %p88 = scmp.ne.s32.totalorder %s77, %s78
    %p89 = scmp.eq.s32.totalorder %s16, 0
    %p90 = por %p88, %p89
    %p91 = scmp.ne.s32.totalorder %s77, %s78
    %p92 = scmp.eq.s32.totalorder %s17, 7
    %p93 = por %p91, %p92
    %p95 = scmp.ne.s32.totalorder %s78, %s94
    %p96 = scmp.eq.s32.totalorder %s17, 0
    %p97 = por %p95, %p96
    %s98 = sadd.s32 %s19, 1
    %s99 = smul.u32 %s98, 4
    %s100 = sadd.s32 %s99, 1
    %s101 = sadd.s32 %s33, 1
    %s102 = smul.u32 %s101, 4
    %s103 = sadd.s32 %s102, 1
    %s104 = ssub.s32 %s18, %s37
    %s105 = ssub.s32 %s100, %s103
    %s106 = sor.u32 %s104, %s105
    %p107 = scmp.eq.s32.totalorder %s106, 0
    %s109 = sadd.s32 %s108, 1
    %s110 = scalar_select %p107, %s108, %s109
    %p113 = pneg %p107
    %p114 = scmp.eq.s32.totalorder %s11, 7
    %p115 = por %p113, %p114
    %p116 = scmp.ne.s32.totalorder %s108, %s111
    %p117 = scmp.eq.s32.totalorder %s11, 0
    %p118 = por %p116, %p117
    %p119 = scmp.ne.s32.totalorder %s108, %s111
    %p120 = scmp.eq.s32.totalorder %s16, 7
    %p121 = por %p119, %p120
    %p122 = scmp.ne.s32.totalorder %s111, %s112
    %p123 = scmp.eq.s32.totalorder %s16, 0
    %p124 = por %p122, %p123
    %p125 = scmp.ne.s32.totalorder %s111, %s112
    %p126 = scmp.eq.s32.totalorder %s17, 7
    %p127 = por %p125, %p126
    %p129 = scmp.ne.s32.totalorder %s112, %s128
    %p130 = scmp.eq.s32.totalorder %s17, 0
    %p131 = por %p129, %p130
    %s132 = ssub.s32 %s20, %s29
    %p133 = scmp.eq.s32.totalorder %s132, 0
    %s135 = sadd.s32 %s134, 1
    %s136 = scalar_select %p133, %s134, %s135
    %p139 = pneg %p133
    %p140 = scmp.eq.s32.totalorder %s11, 7
    %p141 = por %p139, %p140
    %p142 = scmp.ne.s32.totalorder %s134, %s137
    %p143 = scmp.eq.s32.totalorder %s11, 0
    %p144 = por %p142, %p143
    %p145 = scmp.ne.s32.totalorder %s134, %s137
    %p146 = scmp.eq.s32.totalorder %s16, 7
    %p147 = por %p145, %p146
    %p148 = scmp.ne.s32.totalorder %s137, %s138
    %p149 = scmp.eq.s32.totalorder %s16, 0
    %p150 = por %p148, %p149
    %p151 = scmp.ne.s32.totalorder %s137, %s138
    %p152 = scmp.eq.s32.totalorder %s17, 7
    %p153 = por %p151, %p152
    %p155 = scmp.ne.s32.totalorder %s138, %s154
    %p156 = scmp.eq.s32.totalorder %s17, 0
    %p157 = por %p155, %p156
    %s158 = ssub.s32 %s20, %s29
    %p159 = scmp.eq.s32.totalorder %s158, 0
    %s161 = sadd.s32 %s160, 1
    %s162 = scalar_select %p159, %s160, %s161
    %p165 = pneg %p159
    %p166 = scmp.eq.s32.totalorder %s11, 7
    %p167 = por %p165, %p166
    %p168 = scmp.ne.s32.totalorder %s160, %s163
    %p169 = scmp.eq.s32.totalorder %s11, 0
    %p170 = por %p168, %p169
    %p171 = scmp.ne.s32.totalorder %s160, %s163
    %p172 = scmp.eq.s32.totalorder %s16, 7
    %p173 = por %p171, %p172
    %p174 = scmp.ne.s32.totalorder %s163, %s164
    %p175 = scmp.eq.s32.totalorder %s16, 0
    %p176 = por %p174, %p175
    %p177 = scmp.ne.s32.totalorder %s163, %s164
    %p178 = scmp.eq.s32.totalorder %s17, 7
    %p179 = por %p177, %p178
    %p181 = scmp.ne.s32.totalorder %s164, %s180
    %p182 = scmp.eq.s32.totalorder %s17, 0
    %p183 = por %p181, %p182
    %s184 = ssub.s32 %s18, %s37
    %s185 = ssub.s32 %s19, %s33
    %s186 = sor.u32 %s184, %s185
    %s187 = ssub.s32 %s20, %s29
    %s188 = sor.u32 %s186, %s187
    %p189 = scmp.eq.s32.totalorder %s188, 0
    %s191 = sadd.s32 %s190, 1
    %s192 = scalar_select %p189, %s190, %s191
    %p195 = pneg %p189
    %p196 = scmp.eq.s32.totalorder %s11, 7
    %p197 = por %p195, %p196
    %p198 = scmp.ne.s32.totalorder %s190, %s193
    %p199 = scmp.eq.s32.totalorder %s11, 0
    %p200 = por %p198, %p199
    %p201 = scmp.ne.s32.totalorder %s190, %s193
    %p202 = scmp.eq.s32.totalorder %s16, 7
    %p203 = por %p201, %p202
    %p204 = scmp.ne.s32.totalorder %s193, %s194
    %p205 = scmp.eq.s32.totalorder %s16, 0
    %p206 = por %p204, %p205
    %p207 = scmp.ne.s32.totalorder %s193, %s194
    %p208 = scmp.eq.s32.totalorder %s17, 7
    %p209 = por %p207, %p208
    %p211 = scmp.ne.s32.totalorder %s194, %s210
    %p212 = scmp.eq.s32.totalorder %s17, 0
    %p213 = por %p211, %p212
    %p214 = scmp.le.s32.totalorder 1, %s11
    %p215 = scmp.lt.s32.totalorder %s11, 9
    %p216 = pnand %p214, %p215
    %p217 = pneg %p216
    // Predicated region
    $region9: #{tpu_custom_call.1} parent=5 // pred_check
      _
    $region10: #{tpu_custom_call.1} parent=5 // pred_check_branch
      %219 = sbr.rel (%p216) target = $region12
    $region11: #{tpu_custom_call.1} parent=5 // pred_region
      %s220 = ssub.s32 %s11, 1
      // Predicated region
      $region13: #{tpu_custom_call.1} parent=11 // pred_check
        %p221 = pneg %p150
      $region14: #{tpu_custom_call.1} parent=11 // pred_check_branch
        %223 = sbr.rel (%p221) target = $region16
      $region15: #{tpu_custom_call.1} parent=11 // pred_region
        %p224 = scmp.lt.s32.totalorder %s23, 0
        %s225 = scalar_select %p224, %s23, 0
        %s226 = smul.addr %s225, 4
        %s227 = scalar_lea.vmem %s3, %s226
      $region16: #{tpu_custom_call.1} parent=11 // pred_fallthru
        _
      // Predicated region
      $region17: #{tpu_custom_call.1} parent=11 // pred_check
        %p228 = pneg %p176
      $region18: #{tpu_custom_call.1} parent=11 // pred_check_branch
        %230 = sbr.rel (%p228) target = $region20
      $region19: #{tpu_custom_call.1} parent=11 // pred_region
        %p231 = scmp.lt.s32.totalorder %s23, 0
        %s232 = scalar_select %p231, %s23, 0
        %s233 = scalar_lea.vmem %s4, %s232
      $region20: #{tpu_custom_call.1} parent=11 // pred_fallthru
        _
    $region12: #{tpu_custom_call.1} parent=5 // pred_fallthru
      _
    %p234 = scmp.lt.s32.totalorder %s11, 8
    // Predicated region
    $region21: #{tpu_custom_call.1} parent=5 // pred_check
      %p235 = pneg %p234
    $region22: #{tpu_custom_call.1} parent=5 // pred_check_branch
      %237 = sbr.rel (%p235) target = $region24
    $region23: #{tpu_custom_call.1} parent=5 // pred_region
      // Predicated region
      $region25: #{tpu_custom_call.1} parent=23 // pred_check
        %p238 = pneg %p52
      $region26: #{tpu_custom_call.1} parent=23 // pred_check_branch
        %240 = sbr.rel (%p238) target = $region28
      $region27: #{tpu_custom_call.1} parent=23 // pred_region
        %s241 = smul.u32 12, %s19
        %s242 = ssub.s32 54, %s241
        %p243 = scmp.lt.s32.totalorder %s242, 12
        %s244 = scalar_select %p243, %s242, 12
        %s245 = smul.u32 8, %s244
        %p246 = scmp.lt.s32.totalorder %s18, 1
        %s247 = scalar_select %p246, %s18, 1
        %p248 = scmp.lt.s32.totalorder %s241, 53
        %s249 = scalar_select %p248, %s241, 53
        %s250 = smul.addr %s247, 54
        %s251 = sadd.s32 %s249, %s250
        %s252 = smul.addr %s251, 8
        %s253 = scalar_lea.vmem %s0, %s252
        %s254 = smul.u32 12, %s19
        %s255 = ssub.s32 54, %s254
        %p256 = scmp.lt.s32.totalorder %s255, 12
        %s257 = scalar_select %p256, %s255, 12
        %s258 = smul.u32 8, %s257
      $region28: #{tpu_custom_call.1} parent=23 // pred_fallthru
        _
      // Predicated region
      $region29: #{tpu_custom_call.1} parent=23 // pred_check
        %p259 = pneg %p84
      $region30: #{tpu_custom_call.1} parent=23 // pred_check_branch
        %261 = sbr.rel (%p259) target = $region32
      $region31: #{tpu_custom_call.1} parent=23 // pred_region
        %s262 = sadd.s32 %s19, 1
        %s263 = smul.u32 %s262, 4
        %s264 = smul.u32 3, %s263
        %p265 = scmp.lt.s32.totalorder %s18, 1
        %s266 = scalar_select %p265, %s18, 1
        %p267 = scmp.lt.s32.totalorder %s264, 53
        %s268 = scalar_select %p267, %s264, 53
        %s269 = smul.addr %s266, 54
        %s270 = sadd.s32 %s268, %s269
        %s271 = smul.addr %s270, 8
        %s272 = scalar_lea.vmem %s1, %s271
        %s273 = sadd.s32 %s19, 1
        %s274 = smul.u32 %s273, 4
        %s275 = smul.u32 3, %s274
      $region32: #{tpu_custom_call.1} parent=23 // pred_fallthru
        _
      // Predicated region
      $region33: #{tpu_custom_call.1} parent=23 // pred_check
        %p276 = pneg %p118
      $region34: #{tpu_custom_call.1} parent=23 // pred_check_branch
        %278 = sbr.rel (%p276) target = $region36
      $region35: #{tpu_custom_call.1} parent=23 // pred_region
        %s279 = sadd.s32 %s19, 1
        %s280 = smul.u32 %s279, 4
        %s281 = sadd.s32 %s280, 1
        %s282 = smul.u32 3, %s281
        %p283 = scmp.lt.s32.totalorder %s18, 1
        %s284 = scalar_select %p283, %s18, 1
        %p285 = scmp.lt.s32.totalorder %s282, 53
        %s286 = scalar_select %p285, %s282, 53
        %s287 = smul.addr %s284, 54
        %s288 = sadd.s32 %s286, %s287
        %s289 = smul.addr %s288, 8
        %s290 = scalar_lea.vmem %s2, %s289
        %s291 = sadd.s32 %s19, 1
        %s292 = smul.u32 %s291, 4
        %s293 = sadd.s32 %s292, 1
        %s294 = smul.u32 3, %s293
      $region36: #{tpu_custom_call.1} parent=23 // pred_fallthru
        _
    $region24: #{tpu_custom_call.1} parent=5 // pred_fallthru
      _
    %p295 = scmp.le.s32.totalorder 1, %s11
    %p296 = scmp.lt.s32.totalorder %s11, 9
    %p297 = pnand %p295, %p296
    %p298 = pneg %p297
    // Predicated region
    $region37: #{tpu_custom_call.1} parent=5 // pred_check
      _
    $region38: #{tpu_custom_call.1} parent=5 // pred_check_branch
      %300 = sbr.rel (%p297) target = $region40
    $region39: #{tpu_custom_call.1} parent=5 // pred_region
      %s301 = ssub.s32 %s11, 1
      %s302 = smul.u32 12, %s22
      %s303 = ssub.s32 54, %s302
      %p304 = scmp.lt.s32.totalorder %s303, 12
      %s305 = scalar_select %p304, %s303, 12
      %s306 = smul.u32 8, %s305
      %p307 = scmp.lt.s32.totalorder %s21, 1
      %s308 = scalar_select %p307, %s21, 1
      %p309 = scmp.lt.s32.totalorder %s302, 53
      %s310 = scalar_select %p309, %s302, 53
      %s311 = smul.addr %s308, 54
      %s312 = sadd.s32 %s310, %s311
      %s313 = smul.addr %s312, 8
      %s314 = scalar_lea.vmem %s0, %s313
      %p315 = pneg %p58
      %p316 = pneg %p55
      %s317 = sadd.s32 %s22, 1
      %s318 = smul.u32 %s317, 4
      %s319 = smul.u32 3, %s318
      %p320 = scmp.lt.s32.totalorder %s21, 1
      %s321 = scalar_select %p320, %s21, 1
      %p322 = scmp.lt.s32.totalorder %s319, 53
      %s323 = scalar_select %p322, %s319, 53
      %s324 = smul.addr %s321, 54
      %s325 = sadd.s32 %s323, %s324
      %s326 = smul.addr %s325, 8
      %s327 = scalar_lea.vmem %s1, %s326
      %p328 = pneg %p90
      %p329 = pneg %p87
      %s330 = sadd.s32 %s22, 1
      %s331 = smul.u32 %s330, 4
      %s332 = sadd.s32 %s331, 1
      %s333 = smul.u32 3, %s332
      %p334 = scmp.lt.s32.totalorder %s21, 1
      %s335 = scalar_select %p334, %s21, 1
      %p336 = scmp.lt.s32.totalorder %s333, 53
      %s337 = scalar_select %p336, %s333, 53
      %s338 = smul.addr %s335, 54
      %s339 = sadd.s32 %s337, %s338
      %s340 = smul.addr %s339, 8
      %s341 = scalar_lea.vmem %s2, %s340
      %p342 = pneg %p124
      %p343 = pneg %p121
      %p344 = scmp.lt.s32.totalorder %s23, 0
      %s345 = scalar_select %p344, %s23, 0
      %s346 = smul.addr %s345, 4
      %s347 = scalar_lea.vmem %s3, %s346
      %p348 = pneg %p150
      %p349 = pneg %p147
      %p350 = scmp.lt.s32.totalorder %s23, 0
      %s351 = scalar_select %p350, %s23, 0
      %s352 = scalar_lea.vmem %s4, %s351
      %p353 = pneg %p176
      %p354 = pneg %p173
      %p355 = pneg %p206
      %p356 = pneg %p203
      %s357 = smul.u32 12, %s22
      %p358 = scmp.lt.s32.totalorder %s21, 1
      %s359 = scalar_select %p358, %s21, 1
      %p360 = scmp.lt.s32.totalorder %s357, 47
      %s361 = scalar_select %p360, %s357, 47
      %p362 = scmp.lt.s32.totalorder %s23, 0
      %s363 = scalar_select %p362, %s23, 0
      %s364 = sadd.s32 %s363, %s361
      %s365 = smul.addr %s359, 48
      %s366 = sadd.s32 %s364, %s365
      %s367 = smul.addr %s366, 8
      %s368 = scalar_lea.vmem %s5, %s367
      %s369 = smul.u32 12, %s22
      %s370 = ssub.s32 54, %s369
      %p371 = scmp.lt.s32.totalorder %s370, 12
      %s372 = scalar_select %p371, %s370, 12
      %s373 = smul.u32 8, %s372
      %p374 = scmp.lt.s32.totalorder %s21, 1
      %s375 = scalar_select %p374, %s21, 1
      %p376 = scmp.lt.s32.totalorder %s369, 53
      %s377 = scalar_select %p376, %s369, 53
      %s378 = smul.addr %s375, 54
      %s379 = sadd.s32 %s377, %s378
      %s380 = smul.addr %s379, 8
      %s381 = scalar_lea.vmem %s0, %s380
      %s382 = smul.u32 12, %s22
      %s383 = ssub.s32 54, %s382
      %p384 = scmp.lt.s32.totalorder %s383, 12
      %s385 = scalar_select %p384, %s383, 12
      %s386 = smul.u32 8, %s385
      %s387 = sadd.s32 %s22, 1
      %s388 = smul.u32 %s387, 4
      %s389 = smul.u32 3, %s388
      %p390 = scmp.lt.s32.totalorder %s21, 1
      %s391 = scalar_select %p390, %s21, 1
      %p392 = scmp.lt.s32.totalorder %s389, 53
      %s393 = scalar_select %p392, %s389, 53
      %s394 = smul.addr %s391, 54
      %s395 = sadd.s32 %s393, %s394
      %s396 = smul.addr %s395, 8
      %s397 = scalar_lea.vmem %s1, %s396
      %s398 = sadd.s32 %s22, 1
      %s399 = smul.u32 %s398, 4
      %s400 = smul.u32 3, %s399
      %s401 = sadd.s32 %s22, 1
      %s402 = smul.u32 %s401, 4
      %s403 = sadd.s32 %s402, 1
      %s404 = smul.u32 3, %s403
      %p405 = scmp.lt.s32.totalorder %s21, 1
      %s406 = scalar_select %p405, %s21, 1
      %p407 = scmp.lt.s32.totalorder %s404, 53
      %s408 = scalar_select %p407, %s404, 53
      %s409 = smul.addr %s406, 54
      %s410 = sadd.s32 %s408, %s409
      %s411 = smul.addr %s410, 8
      %s412 = scalar_lea.vmem %s2, %s411
      %s413 = sadd.s32 %s22, 1
      %s414 = smul.u32 %s413, 4
      %s415 = sadd.s32 %s414, 1
      %s416 = smul.u32 3, %s415
      %p417 = scmp.lt.s32.totalorder %s23, 0
      %s418 = scalar_select %p417, %s23, 0
      %s419 = smul.addr %s418, 4
      %s420 = scalar_lea.vmem %s3, %s419
      %p421 = scmp.lt.s32.totalorder %s23, 0
      %s422 = scalar_select %p421, %s23, 0
      %s423 = scalar_lea.vmem %s4, %s422
      %s424 = smul.u32 12, %s22
      %p425 = scmp.lt.s32.totalorder %s21, 1
      %s426 = scalar_select %p425, %s21, 1
      %p427 = scmp.lt.s32.totalorder %s424, 47
      %s428 = scalar_select %p427, %s424, 47
      %p429 = scmp.lt.s32.totalorder %s23, 0
      %s430 = scalar_select %p429, %s23, 0
      %s431 = sadd.s32 %s430, %s428
      %s432 = smul.addr %s426, 48
      %s433 = sadd.s32 %s431, %s432
      %s434 = smul.addr %s433, 8
      %s435 = scalar_lea.vmem %s5, %s434
      %s436 = smul.u32 12, %s22
      %v437 = vld [vmem:[%s381] sm:$0xff]
      %v438 = vld [vmem:[%s381 + $0x8] sm:$0xff]
      %v439 = vld [vmem:[%s381 + $0x10] sm:$0xff]
      %v440 = vld [vmem:[%s381 + $0x18] sm:$0xff]
      %v441 = vld [vmem:[%s381 + $0x20] sm:$0xff]
      %v442 = vld [vmem:[%s381 + $0x28] sm:$0xff]
      %v443 = vld [vmem:[%s381 + $0x30] sm:$0xff]
      %v444 = vld [vmem:[%s381 + $0x38] sm:$0xff]
      %v445 = vld [vmem:[%s381 + $0x40] sm:$0xff]
      %v446 = vld [vmem:[%s381 + $0x48] sm:$0xff]
      %v447 = vld [vmem:[%s381 + $0x50] sm:$0xff]
      %v448 = vld [vmem:[%s381 + $0x58] sm:$0xff]
      %v449 = vld [vmem:[%s397] sm:$0xff]
      %v450 = vld [vmem:[%s397 + $0x8] sm:$0xff]
      %v451 = vld [vmem:[%s397 + $0x10] sm:$0xff]
      %v452 = vld [vmem:[%s412] sm:$0xff]
      %v453 = vld [vmem:[%s412 + $0x8] sm:$0xff]
      %v454 = vld [vmem:[%s412 + $0x10] sm:$0xff]
      %v455 = vld [vmem:[%s420] sm:$0xf]
      %s456 = scalar_lea.vmem %s420, 12
      %v457 = vld [vmem:[%s456] sm:$0xf]
      %vm458 = vcmask 31744
      %v460 = vsel %vm458, %v440, 0
      %v463 = vsel %vm458, %v441, 0
      %v466 = vsel %vm458, %v442, 0
      %v469 = vsel %vm458, %v443, 0
      %v472 = vsel %vm458, %v444, 0
      %v475 = vsel %vm458, %v445, 0
      %v478 = vsel %vm458, %v446, 0
      %v481 = vsel %vm458, %v447, 0
      %v484 = vsel %vm458, %v448, 0
      %v487 = vsel %vm458, %v449, 0
      %v490 = vsel %vm458, %v450, 0
      %v493 = vsel %vm458, %v451, 0
      %vm495 = vcmask 1043456
      %v497 = vsel %vm495, %v457, 0
      %499 = vmatpush.msra.mxu0 0.0
      %500 = vmatpush.msra.mxu0 0.0
      %501 = vmatpush.msra.mxu0 0.0
      %502 = vmatpush.msra.mxu0 0.0
      %503 = vmatpush.msra.mxu0 0.0
      %504 = vmatpush.msra.mxu0 0.0
      %505 = vmatpush.msra.mxu0 0.0
      %506 = vmatpush.msra.mxu0 0.0
      %507 = vmatpush.msra.mxu0 0.0
      %508 = vmatpush.msra.mxu0 0.0
      %509 = vmatpush.msra.mxu0 0.0
      %510 = vmatpush.msra.mxu0 0.0
      %511 = vmatpush.msra.mxu0 0.0
      %512 = vmatpush.msra.mxu0 0.0
      %513 = vmatpush.msra.mxu0 0.0
      %514 = vmatpush.msra.mxu0 %v497
      %515 = vmatmul.f32.gmra.mxu0 %v460
      %v516 = vpop.f32.mrf.mxu0
      %v517 = vadd.f32 0.0, %v516
      %518 = vmatmul.f32.gmra.mxu0 %v463
      %v519 = vpop.f32.mrf.mxu0
      %v520 = vadd.f32 0.0, %v519
      %521 = vmatmul.f32.gmra.mxu0 %v466
      %v522 = vpop.f32.mrf.mxu0
      %v523 = vadd.f32 0.0, %v522
      %524 = vmatmul.f32.gmra.mxu0 %v469
      %v525 = vpop.f32.mrf.mxu0
      %v526 = vadd.f32 0.0, %v525
      %527 = vmatmul.f32.gmra.mxu0 %v472
      %v528 = vpop.f32.mrf.mxu0
      %v529 = vadd.f32 0.0, %v528
      %530 = vmatmul.f32.gmra.mxu0 %v475
      %v531 = vpop.f32.mrf.mxu0
      %v532 = vadd.f32 0.0, %v531
      %533 = vmatmul.f32.gmra.mxu0 %v478
      %v534 = vpop.f32.mrf.mxu0
      %v535 = vadd.f32 0.0, %v534
      %536 = vmatmul.f32.gmra.mxu0 %v481
      %v537 = vpop.f32.mrf.mxu0
      %v538 = vadd.f32 0.0, %v537
      %539 = vmatmul.f32.gmra.mxu0 %v484
      %v540 = vpop.f32.mrf.mxu0
      %v541 = vadd.f32 0.0, %v540
      %542 = vmatmul.f32.gmra.mxu0 %v487
      %v543 = vpop.f32.mrf.mxu0
      %v544 = vadd.f32 0.0, %v543
      %545 = vmatmul.f32.gmra.mxu0 %v490
      %v546 = vpop.f32.mrf.mxu0
      %v547 = vadd.f32 0.0, %v546
      %548 = vmatmul.f32.gmra.mxu0 %v493
      %v549 = vpop.f32.mrf.mxu0
      %v550 = vadd.f32 0.0, %v549
      %551 = vdwg.mxu0
      %v553 = vsel %vm458, %v437, 0
      %v556 = vsel %vm458, %v438, 0
      %v559 = vsel %vm458, %v439, 0
      %v562 = vsel %vm495, %v455, 0
      %564 = vmatpush.msra.mxu0 0.0
      %565 = vmatpush.msra.mxu0 0.0
      %566 = vmatpush.msra.mxu0 0.0
      %567 = vmatpush.msra.mxu0 0.0
      %568 = vmatpush.msra.mxu0 0.0
      %569 = vmatpush.msra.mxu0 0.0
      %570 = vmatpush.msra.mxu0 0.0
      %571 = vmatpush.msra.mxu0 0.0
      %572 = vmatpush.msra.mxu0 0.0
      %573 = vmatpush.msra.mxu0 0.0
      %574 = vmatpush.msra.mxu0 0.0
      %575 = vmatpush.msra.mxu0 0.0
      %576 = vmatpush.msra.mxu0 0.0
      %577 = vmatpush.msra.mxu0 0.0
      %578 = vmatpush.msra.mxu0 0.0
      %579 = vmatpush.msra.mxu0 %v562
      %580 = vmatmul.f32.gmra.mxu0 %v553
      %v581 = vpop.f32.mrf.mxu0
      %v582 = vadd.f32 %v517, %v581
      %583 = vmatmul.f32.gmra.mxu0 %v556
      %v584 = vpop.f32.mrf.mxu0
      %v585 = vadd.f32 %v520, %v584
      %586 = vmatmul.f32.gmra.mxu0 %v559
      %v587 = vpop.f32.mrf.mxu0
      %v588 = vadd.f32 %v523, %v587
      %589 = vmatmul.f32.gmra.mxu0 %v460
      %v590 = vpop.f32.mrf.mxu0
      %v591 = vadd.f32 %v526, %v590
      %592 = vmatmul.f32.gmra.mxu0 %v463
      %v593 = vpop.f32.mrf.mxu0
      %v594 = vadd.f32 %v529, %v593
      %595 = vmatmul.f32.gmra.mxu0 %v466
      %v596 = vpop.f32.mrf.mxu0
      %v597 = vadd.f32 %v532, %v596
      %598 = vmatmul.f32.gmra.mxu0 %v469
      %v599 = vpop.f32.mrf.mxu0
      %v600 = vadd.f32 %v535, %v599
      %601 = vmatmul.f32.gmra.mxu0 %v472
      %v602 = vpop.f32.mrf.mxu0
      %v603 = vadd.f32 %v538, %v602
      %604 = vmatmul.f32.gmra.mxu0 %v475
      %v605 = vpop.f32.mrf.mxu0
      %v606 = vadd.f32 %v541, %v605
      %607 = vmatmul.f32.gmra.mxu0 %v478
      %v608 = vpop.f32.mrf.mxu0
      %v609 = vadd.f32 %v544, %v608
      %610 = vmatmul.f32.gmra.mxu0 %v481
      %v611 = vpop.f32.mrf.mxu0
      %v612 = vadd.f32 %v547, %v611
      %613 = vmatmul.f32.gmra.mxu0 %v484
      %v614 = vpop.f32.mrf.mxu0
      %v615 = vadd.f32 %v550, %v614
      %616 = vdwg.mxu0
      %s617 = scalar_lea.vmem %s420, 24
      %v618 = vld [vmem:[%s617] sm:$0xf]
      %v620 = vsel %vm458, %v452, 0
      %v623 = vsel %vm458, %v453, 0
      %v626 = vsel %vm458, %v454, 0
      %v629 = vsel %vm495, %v618, 0
      %631 = vmatpush.msra.mxu0 0.0
      %632 = vmatpush.msra.mxu0 0.0
      %633 = vmatpush.msra.mxu0 0.0
      %634 = vmatpush.msra.mxu0 0.0
      %635 = vmatpush.msra.mxu0 0.0
      %636 = vmatpush.msra.mxu0 0.0
      %637 = vmatpush.msra.mxu0 0.0
      %638 = vmatpush.msra.mxu0 0.0
      %639 = vmatpush.msra.mxu0 0.0
      %640 = vmatpush.msra.mxu0 0.0
      %641 = vmatpush.msra.mxu0 0.0
      %642 = vmatpush.msra.mxu0 0.0
      %643 = vmatpush.msra.mxu0 0.0
      %644 = vmatpush.msra.mxu0 0.0
      %645 = vmatpush.msra.mxu0 0.0
      %646 = vmatpush.msra.mxu0 %v629
      %647 = vmatmul.f32.gmra.mxu0 %v469
      %v648 = vpop.f32.mrf.mxu0
      %v649 = vadd.f32 0.0, %v648
      %650 = vmatmul.f32.gmra.mxu0 %v472
      %v651 = vpop.f32.mrf.mxu0
      %v652 = vadd.f32 0.0, %v651
      %653 = vmatmul.f32.gmra.mxu0 %v475
      %v654 = vpop.f32.mrf.mxu0
      %v655 = vadd.f32 0.0, %v654
      %656 = vmatmul.f32.gmra.mxu0 %v478
      %v657 = vpop.f32.mrf.mxu0
      %v658 = vadd.f32 0.0, %v657
      %659 = vmatmul.f32.gmra.mxu0 %v481
      %v660 = vpop.f32.mrf.mxu0
      %v661 = vadd.f32 0.0, %v660
      %662 = vmatmul.f32.gmra.mxu0 %v484
      %v663 = vpop.f32.mrf.mxu0
      %v664 = vadd.f32 0.0, %v663
      %665 = vmatmul.f32.gmra.mxu0 %v487
      %v666 = vpop.f32.mrf.mxu0
      %v667 = vadd.f32 0.0, %v666
      %668 = vmatmul.f32.gmra.mxu0 %v490
      %v669 = vpop.f32.mrf.mxu0
      %v670 = vadd.f32 0.0, %v669
      %671 = vmatmul.f32.gmra.mxu0 %v493
      %v672 = vpop.f32.mrf.mxu0
      %v673 = vadd.f32 0.0, %v672
      %674 = vmatmul.f32.gmra.mxu0 %v620
      %v675 = vpop.f32.mrf.mxu0
      %v676 = vadd.f32 0.0, %v675
      %677 = vmatmul.f32.gmra.mxu0 %v623
      %v678 = vpop.f32.mrf.mxu0
      %v679 = vadd.f32 0.0, %v678
      %680 = vmatmul.f32.gmra.mxu0 %v626
      %v681 = vpop.f32.mrf.mxu0
      %v682 = vadd.f32 0.0, %v681
      %683 = vdwg.mxu0
      %v684 = vadd.f32 %v582, %v649
      %v685 = vadd.f32 %v585, %v652
      %v686 = vadd.f32 %v588, %v655
      %v687 = vadd.f32 %v591, %v658
      %v688 = vadd.f32 %v594, %v661
      %v689 = vadd.f32 %v597, %v664
      %v690 = vadd.f32 %v600, %v667
      %v691 = vadd.f32 %v603, %v670
      %v692 = vadd.f32 %v606, %v673
      %v693 = vadd.f32 %v609, %v676
      %v694 = vadd.f32 %v612, %v679
      %v695 = vadd.f32 %v615, %v682
      %s696 = scalar_lea.vmem %s420, 4
      %v697 = vld [vmem:[%s696] sm:$0xf]
      %vm698 = vcmask 1046528
      %v699 = vrot.slane %v437, 1
      %v700 = vrot.slane %v438, 1
      %v701 = vsel %vm698, %v699, %v700
      %v702 = vrot.slane %v439, 1
      %v703 = vsel %vm698, %v700, %v702
      %v704 = vrot.slane %v440, 1
      %v705 = vsel %vm698, %v702, %v704
      %v706 = vrot.slane %v441, 1
      %v707 = vsel %vm698, %v704, %v706
      %v708 = vrot.slane %v442, 1
      %v709 = vsel %vm698, %v706, %v708
      %v710 = vrot.slane %v443, 1
      %v711 = vsel %vm698, %v708, %v710
      %v712 = vrot.slane %v444, 1
      %v713 = vsel %vm698, %v710, %v712
      %v714 = vrot.slane %v445, 1
      %v715 = vsel %vm698, %v712, %v714
      %v716 = vrot.slane %v446, 1
      %v717 = vsel %vm698, %v714, %v716
      %v718 = vrot.slane %v447, 1
      %v719 = vsel %vm698, %v716, %v718
      %v720 = vrot.slane %v448, 1
      %v721 = vsel %vm698, %v718, %v720
      %v722 = vrot.slane %v449, 1
      %v723 = vsel %vm698, %v720, %v722
      %v724 = vsel %vm458, %v701, 0
      %v726 = vsel %vm458, %v703, 0
      %v728 = vsel %vm458, %v705, 0
      %v730 = vsel %vm458, %v707, 0
      %v732 = vsel %vm458, %v709, 0
      %v734 = vsel %vm458, %v711, 0
      %v736 = vsel %vm458, %v713, 0
      %v738 = vsel %vm458, %v715, 0
      %v740 = vsel %vm458, %v717, 0
      %v742 = vsel %vm458, %v719, 0
      %v744 = vsel %vm458, %v721, 0
      %v746 = vsel %vm458, %v723, 0
      %v749 = vsel %vm495, %v697, 0
      %751 = vmatpush.msra.mxu0 0.0
      %752 = vmatpush.msra.mxu0 0.0
      %753 = vmatpush.msra.mxu0 0.0
      %754 = vmatpush.msra.mxu0 0.0
      %755 = vmatpush.msra.mxu0 0.0
      %756 = vmatpush.msra.mxu0 0.0
      %757 = vmatpush.msra.mxu0 0.0
      %758 = vmatpush.msra.mxu0 0.0
      %759 = vmatpush.msra.mxu0 0.0
      %760 = vmatpush.msra.mxu0 0.0
      %761 = vmatpush.msra.mxu0 0.0
      %762 = vmatpush.msra.mxu0 0.0
      %763 = vmatpush.msra.mxu0 0.0
      %764 = vmatpush.msra.mxu0 0.0
      %765 = vmatpush.msra.mxu0 0.0
      %766 = vmatpush.msra.mxu0 %v749
      %767 = vmatmul.f32.gmra.mxu0 %v724
      %v768 = vpop.f32.mrf.mxu0
      %v769 = vadd.f32 0.0, %v768
      %770 = vmatmul.f32.gmra.mxu0 %v726
      %v771 = vpop.f32.mrf.mxu0
      %v772 = vadd.f32 0.0, %v771
      %773 = vmatmul.f32.gmra.mxu0 %v728
      %v774 = vpop.f32.mrf.mxu0
      %v775 = vadd.f32 0.0, %v774
      %776 = vmatmul.f32.gmra.mxu0 %v730
      %v777 = vpop.f32.mrf.mxu0
      %v778 = vadd.f32 0.0, %v777
      %779 = vmatmul.f32.gmra.mxu0 %v732
      %v780 = vpop.f32.mrf.mxu0
      %v781 = vadd.f32 0.0, %v780
      %782 = vmatmul.f32.gmra.mxu0 %v734
      %v783 = vpop.f32.mrf.mxu0
      %v784 = vadd.f32 0.0, %v783
      %785 = vmatmul.f32.gmra.mxu0 %v736
      %v786 = vpop.f32.mrf.mxu0
      %v787 = vadd.f32 0.0, %v786
      %788 = vmatmul.f32.gmra.mxu0 %v738
      %v789 = vpop.f32.mrf.mxu0
      %v790 = vadd.f32 0.0, %v789
      %791 = vmatmul.f32.gmra.mxu0 %v740
      %v792 = vpop.f32.mrf.mxu0
      %v793 = vadd.f32 0.0, %v792
      %794 = vmatmul.f32.gmra.mxu0 %v742
      %v795 = vpop.f32.mrf.mxu0
      %v796 = vadd.f32 0.0, %v795
      %797 = vmatmul.f32.gmra.mxu0 %v744
      %v798 = vpop.f32.mrf.mxu0
      %v799 = vadd.f32 0.0, %v798
      %800 = vmatmul.f32.gmra.mxu0 %v746
      %v801 = vpop.f32.mrf.mxu0
      %v802 = vadd.f32 0.0, %v801
      %803 = vdwg.mxu0
      %v804 = vadd.f32 %v684, %v769
      %v805 = vadd.f32 %v685, %v772
      %v806 = vadd.f32 %v686, %v775
      %v807 = vadd.f32 %v687, %v778
      %v808 = vadd.f32 %v688, %v781
      %v809 = vadd.f32 %v689, %v784
      %v810 = vadd.f32 %v690, %v787
      %v811 = vadd.f32 %v691, %v790
      %v812 = vadd.f32 %v692, %v793
      %v813 = vadd.f32 %v693, %v796
      %v814 = vadd.f32 %v694, %v799
      %v815 = vadd.f32 %v695, %v802
      %s816 = scalar_lea.vmem %s420, 16
      %v817 = vld [vmem:[%s816] sm:$0xf]
      %v818 = vrot.slane %v450, 1
      %v819 = vsel %vm698, %v722, %v818
      %v820 = vrot.slane %v451, 1
      %v821 = vsel %vm698, %v818, %v820
      %v822 = vrot.slane %v452, 1
      %v823 = vsel %vm698, %v820, %v822
      %v824 = vsel %vm458, %v819, 0
      %v826 = vsel %vm458, %v821, 0
      %v828 = vsel %vm458, %v823, 0
      %v831 = vsel %vm495, %v817, 0
      %833 = vmatpush.msra.mxu0 0.0
      %834 = vmatpush.msra.mxu0 0.0
      %835 = vmatpush.msra.mxu0 0.0
      %836 = vmatpush.msra.mxu0 0.0
      %837 = vmatpush.msra.mxu0 0.0
      %838 = vmatpush.msra.mxu0 0.0
      %839 = vmatpush.msra.mxu0 0.0
      %840 = vmatpush.msra.mxu0 0.0
      %841 = vmatpush.msra.mxu0 0.0
      %842 = vmatpush.msra.mxu0 0.0
      %843 = vmatpush.msra.mxu0 0.0
      %844 = vmatpush.msra.mxu0 0.0
      %845 = vmatpush.msra.mxu0 0.0
      %846 = vmatpush.msra.mxu0 0.0
      %847 = vmatpush.msra.mxu0 0.0
      %848 = vmatpush.msra.mxu0 %v831
      %849 = vmatmul.f32.gmra.mxu0 %v730
      %v850 = vpop.f32.mrf.mxu0
      %v851 = vadd.f32 0.0, %v850
      %852 = vmatmul.f32.gmra.mxu0 %v732
      %v853 = vpop.f32.mrf.mxu0
      %v854 = vadd.f32 0.0, %v853
      %855 = vmatmul.f32.gmra.mxu0 %v734
      %v856 = vpop.f32.mrf.mxu0
      %v857 = vadd.f32 0.0, %v856
      %858 = vmatmul.f32.gmra.mxu0 %v736
      %v859 = vpop.f32.mrf.mxu0
      %v860 = vadd.f32 0.0, %v859
      %861 = vmatmul.f32.gmra.mxu0 %v738
      %v862 = vpop.f32.mrf.mxu0
      %v863 = vadd.f32 0.0, %v862
      %864 = vmatmul.f32.gmra.mxu0 %v740
      %v865 = vpop.f32.mrf.mxu0
      %v866 = vadd.f32 0.0, %v865
      %867 = vmatmul.f32.gmra.mxu0 %v742
      %v868 = vpop.f32.mrf.mxu0
      %v869 = vadd.f32 0.0, %v868
      %870 = vmatmul.f32.gmra.mxu0 %v744
      %v871 = vpop.f32.mrf.mxu0
      %v872 = vadd.f32 0.0, %v871
      %873 = vmatmul.f32.gmra.mxu0 %v746
      %v874 = vpop.f32.mrf.mxu0
      %v875 = vadd.f32 0.0, %v874
      %876 = vmatmul.f32.gmra.mxu0 %v824
      %v877 = vpop.f32.mrf.mxu0
      %v878 = vadd.f32 0.0, %v877
      %879 = vmatmul.f32.gmra.mxu0 %v826
      %v880 = vpop.f32.mrf.mxu0
      %v881 = vadd.f32 0.0, %v880
      %882 = vmatmul.f32.gmra.mxu0 %v828
      %v883 = vpop.f32.mrf.mxu0
      %v884 = vadd.f32 0.0, %v883
      %885 = vdwg.mxu0
      %v886 = vadd.f32 %v804, %v851
      %v887 = vadd.f32 %v805, %v854
      %v888 = vadd.f32 %v806, %v857
      %v889 = vadd.f32 %v807, %v860
      %v890 = vadd.f32 %v808, %v863
      %v891 = vadd.f32 %v809, %v866
      %v892 = vadd.f32 %v810, %v869
      %v893 = vadd.f32 %v811, %v872
      %v894 = vadd.f32 %v812, %v875
      %v895 = vadd.f32 %v813, %v878
      %v896 = vadd.f32 %v814, %v881
      %v897 = vadd.f32 %v815, %v884
      %s898 = scalar_lea.vmem %s420, 28
      %v899 = vld [vmem:[%s898] sm:$0xf]
      %v901 = vrot.slane %v453, 1
      %v902 = vsel %vm698, %v822, %v901
      %v903 = vrot.slane %v454, 1
      %v904 = vsel %vm698, %v901, %v903
      %v905 = vrot.slane 0.0, 1
      %v906 = vsel %vm698, %v903, %v905
      %v907 = vsel %vm458, %v902, 0
      %v909 = vsel %vm458, %v904, 0
      %v911 = vsel %vm458, %v906, 0
      %v914 = vsel %vm495, %v899, 0
      %916 = vmatpush.msra.mxu0 0.0
      %917 = vmatpush.msra.mxu0 0.0
      %918 = vmatpush.msra.mxu0 0.0
      %919 = vmatpush.msra.mxu0 0.0
      %920 = vmatpush.msra.mxu0 0.0
      %921 = vmatpush.msra.mxu0 0.0
      %922 = vmatpush.msra.mxu0 0.0
      %923 = vmatpush.msra.mxu0 0.0
      %924 = vmatpush.msra.mxu0 0.0
      %925 = vmatpush.msra.mxu0 0.0
      %926 = vmatpush.msra.mxu0 0.0
      %927 = vmatpush.msra.mxu0 0.0
      %928 = vmatpush.msra.mxu0 0.0
      %929 = vmatpush.msra.mxu0 0.0
      %930 = vmatpush.msra.mxu0 0.0
      %931 = vmatpush.msra.mxu0 %v914
      %932 = vmatmul.f32.gmra.mxu0 %v736
      %v933 = vpop.f32.mrf.mxu0
      %v934 = vadd.f32 0.0, %v933
      %935 = vmatmul.f32.gmra.mxu0 %v738
      %v936 = vpop.f32.mrf.mxu0
      %v937 = vadd.f32 0.0, %v936
      %938 = vmatmul.f32.gmra.mxu0 %v740
      %v939 = vpop.f32.mrf.mxu0
      %v940 = vadd.f32 0.0, %v939
      %941 = vmatmul.f32.gmra.mxu0 %v742
      %v942 = vpop.f32.mrf.mxu0
      %v943 = vadd.f32 0.0, %v942
      %944 = vmatmul.f32.gmra.mxu0 %v744
      %v945 = vpop.f32.mrf.mxu0
      %v946 = vadd.f32 0.0, %v945
      %947 = vmatmul.f32.gmra.mxu0 %v746
      %v948 = vpop.f32.mrf.mxu0
      %v949 = vadd.f32 0.0, %v948
      %950 = vmatmul.f32.gmra.mxu0 %v824
      %v951 = vpop.f32.mrf.mxu0
      %v952 = vadd.f32 0.0, %v951
      %953 = vmatmul.f32.gmra.mxu0 %v826
      %v954 = vpop.f32.mrf.mxu0
      %v955 = vadd.f32 0.0, %v954
      %956 = vmatmul.f32.gmra.mxu0 %v828
      %v957 = vpop.f32.mrf.mxu0
      %v958 = vadd.f32 0.0, %v957
      %959 = vmatmul.f32.gmra.mxu0 %v907
      %v960 = vpop.f32.mrf.mxu0
      %v961 = vadd.f32 0.0, %v960
      %962 = vmatmul.f32.gmra.mxu0 %v909
      %v963 = vpop.f32.mrf.mxu0
      %v964 = vadd.f32 0.0, %v963
      %965 = vmatmul.f32.gmra.mxu0 %v911
      %v966 = vpop.f32.mrf.mxu0
      %v967 = vadd.f32 0.0, %v966
      %968 = vdwg.mxu0
      %v969 = vadd.f32 %v886, %v934
      %v970 = vadd.f32 %v887, %v937
      %v971 = vadd.f32 %v888, %v940
      %v972 = vadd.f32 %v889, %v943
      %v973 = vadd.f32 %v890, %v946
      %v974 = vadd.f32 %v891, %v949
      %v975 = vadd.f32 %v892, %v952
      %v976 = vadd.f32 %v893, %v955
      %v977 = vadd.f32 %v894, %v958
      %v978 = vadd.f32 %v895, %v961
      %v979 = vadd.f32 %v896, %v964
      %v980 = vadd.f32 %v897, %v967
      %s981 = scalar_lea.vmem %s420, 8
      %v982 = vld [vmem:[%s981] sm:$0xf]
      %vm983 = vcmask 1045504
      %v984 = vrot.slane %v437, 2
      %v985 = vrot.slane %v438, 2
      %v986 = vsel %vm983, %v984, %v985
      %v987 = vrot.slane %v439, 2
      %v988 = vsel %vm983, %v985, %v987
      %v989 = vrot.slane %v440, 2
      %v990 = vsel %vm983, %v987, %v989
      %v991 = vrot.slane %v441, 2
      %v992 = vsel %vm983, %v989, %v991
      %v993 = vrot.slane %v442, 2
      %v994 = vsel %vm983, %v991, %v993
      %v995 = vrot.slane %v443, 2
      %v996 = vsel %vm983, %v993, %v995
      %v997 = vrot.slane %v444, 2
      %v998 = vsel %vm983, %v995, %v997
      %v999 = vrot.slane %v445, 2
      %v1000 = vsel %vm983, %v997, %v999
      %v1001 = vrot.slane %v446, 2
      %v1002 = vsel %vm983, %v999, %v1001
      %v1003 = vrot.slane %v447, 2
      %v1004 = vsel %vm983, %v1001, %v1003
      %v1005 = vrot.slane %v448, 2
      %v1006 = vsel %vm983, %v1003, %v1005
      %v1007 = vrot.slane %v449, 2
      %v1008 = vsel %vm983, %v1005, %v1007
      %v1009 = vsel %vm458, %v986, 0
      %v1011 = vsel %vm458, %v988, 0
      %v1013 = vsel %vm458, %v990, 0
      %v1015 = vsel %vm458, %v992, 0
      %v1017 = vsel %vm458, %v994, 0
      %v1019 = vsel %vm458, %v996, 0
      %v1021 = vsel %vm458, %v998, 0
      %v1023 = vsel %vm458, %v1000, 0
      %v1025 = vsel %vm458, %v1002, 0
      %v1027 = vsel %vm458, %v1004, 0
      %v1029 = vsel %vm458, %v1006, 0
      %v1031 = vsel %vm458, %v1008, 0
      %v1034 = vsel %vm495, %v982, 0
      %1036 = vmatpush.msra.mxu0 0.0
      %1037 = vmatpush.msra.mxu0 0.0
      %1038 = vmatpush.msra.mxu0 0.0
      %1039 = vmatpush.msra.mxu0 0.0
      %1040 = vmatpush.msra.mxu0 0.0
      %1041 = vmatpush.msra.mxu0 0.0
      %1042 = vmatpush.msra.mxu0 0.0
      %1043 = vmatpush.msra.mxu0 0.0
      %1044 = vmatpush.msra.mxu0 0.0
      %1045 = vmatpush.msra.mxu0 0.0
      %1046 = vmatpush.msra.mxu0 0.0
      %1047 = vmatpush.msra.mxu0 0.0
      %1048 = vmatpush.msra.mxu0 0.0
      %1049 = vmatpush.msra.mxu0 0.0
      %1050 = vmatpush.msra.mxu0 0.0
      %1051 = vmatpush.msra.mxu0 %v1034
      %1052 = vmatmul.f32.gmra.mxu0 %v1009
      %v1053 = vpop.f32.mrf.mxu0
      %v1054 = vadd.f32 0.0, %v1053
      %1055 = vmatmul.f32.gmra.mxu0 %v1011
      %v1056 = vpop.f32.mrf.mxu0
      %v1057 = vadd.f32 0.0, %v1056
      %1058 = vmatmul.f32.gmra.mxu0 %v1013
      %v1059 = vpop.f32.mrf.mxu0
      %v1060 = vadd.f32 0.0, %v1059
      %1061 = vmatmul.f32.gmra.mxu0 %v1015
      %v1062 = vpop.f32.mrf.mxu0
      %v1063 = vadd.f32 0.0, %v1062
      %1064 = vmatmul.f32.gmra.mxu0 %v1017
      %v1065 = vpop.f32.mrf.mxu0
      %v1066 = vadd.f32 0.0, %v1065
      %1067 = vmatmul.f32.gmra.mxu0 %v1019
      %v1068 = vpop.f32.mrf.mxu0
      %v1069 = vadd.f32 0.0, %v1068
      %1070 = vmatmul.f32.gmra.mxu0 %v1021
      %v1071 = vpop.f32.mrf.mxu0
      %v1072 = vadd.f32 0.0, %v1071
      %1073 = vmatmul.f32.gmra.mxu0 %v1023
      %v1074 = vpop.f32.mrf.mxu0
      %v1075 = vadd.f32 0.0, %v1074
      %1076 = vmatmul.f32.gmra.mxu0 %v1025
      %v1077 = vpop.f32.mrf.mxu0
      %v1078 = vadd.f32 0.0, %v1077
      %1079 = vmatmul.f32.gmra.mxu0 %v1027
      %v1080 = vpop.f32.mrf.mxu0
      %v1081 = vadd.f32 0.0, %v1080
      %1082 = vmatmul.f32.gmra.mxu0 %v1029
      %v1083 = vpop.f32.mrf.mxu0
      %v1084 = vadd.f32 0.0, %v1083
      %1085 = vmatmul.f32.gmra.mxu0 %v1031
      %v1086 = vpop.f32.mrf.mxu0
      %v1087 = vadd.f32 0.0, %v1086
      %1088 = vdwg.mxu0
      %v1089 = vadd.f32 %v969, %v1054
      %v1090 = vadd.f32 %v970, %v1057
      %v1091 = vadd.f32 %v971, %v1060
      %v1092 = vadd.f32 %v972, %v1063
      %v1093 = vadd.f32 %v973, %v1066
      %v1094 = vadd.f32 %v974, %v1069
      %v1095 = vadd.f32 %v975, %v1072
      %v1096 = vadd.f32 %v976, %v1075
      %v1097 = vadd.f32 %v977, %v1078
      %v1098 = vadd.f32 %v978, %v1081
      %v1099 = vadd.f32 %v979, %v1084
      %v1100 = vadd.f32 %v980, %v1087
      %s1101 = scalar_lea.vmem %s420, 20
      %v1102 = vld [vmem:[%s1101] sm:$0xf]
      %v1103 = vrot.slane %v450, 2
      %v1104 = vsel %vm983, %v1007, %v1103
      %v1105 = vrot.slane %v451, 2
      %v1106 = vsel %vm983, %v1103, %v1105
      %v1107 = vrot.slane %v452, 2
      %v1108 = vsel %vm983, %v1105, %v1107
      %v1109 = vsel %vm458, %v1104, 0
      %v1111 = vsel %vm458, %v1106, 0
      %v1113 = vsel %vm458, %v1108, 0
      %v1116 = vsel %vm495, %v1102, 0
      %1118 = vmatpush.msra.mxu0 0.0
      %1119 = vmatpush.msra.mxu0 0.0
      %1120 = vmatpush.msra.mxu0 0.0
      %1121 = vmatpush.msra.mxu0 0.0
      %1122 = vmatpush.msra.mxu0 0.0
      %1123 = vmatpush.msra.mxu0 0.0
      %1124 = vmatpush.msra.mxu0 0.0
      %1125 = vmatpush.msra.mxu0 0.0
      %1126 = vmatpush.msra.mxu0 0.0
      %1127 = vmatpush.msra.mxu0 0.0
      %1128 = vmatpush.msra.mxu0 0.0
      %1129 = vmatpush.msra.mxu0 0.0
      %1130 = vmatpush.msra.mxu0 0.0
      %1131 = vmatpush.msra.mxu0 0.0
      %1132 = vmatpush.msra.mxu0 0.0
      %1133 = vmatpush.msra.mxu0 %v1116
      %1134 = vmatmul.f32.gmra.mxu0 %v1015
      %v1135 = vpop.f32.mrf.mxu0
      %v1136 = vadd.f32 0.0, %v1135
      %1137 = vmatmul.f32.gmra.mxu0 %v1017
      %v1138 = vpop.f32.mrf.mxu0
      %v1139 = vadd.f32 0.0, %v1138
      %1140 = vmatmul.f32.gmra.mxu0 %v1019
      %v1141 = vpop.f32.mrf.mxu0
      %v1142 = vadd.f32 0.0, %v1141
      %1143 = vmatmul.f32.gmra.mxu0 %v1021
      %v1144 = vpop.f32.mrf.mxu0
      %v1145 = vadd.f32 0.0, %v1144
      %1146 = vmatmul.f32.gmra.mxu0 %v1023
      %v1147 = vpop.f32.mrf.mxu0
      %v1148 = vadd.f32 0.0, %v1147
      %1149 = vmatmul.f32.gmra.mxu0 %v1025
      %v1150 = vpop.f32.mrf.mxu0
      %v1151 = vadd.f32 0.0, %v1150
      %1152 = vmatmul.f32.gmra.mxu0 %v1027
      %v1153 = vpop.f32.mrf.mxu0
      %v1154 = vadd.f32 0.0, %v1153
      %1155 = vmatmul.f32.gmra.mxu0 %v1029
      %v1156 = vpop.f32.mrf.mxu0
      %v1157 = vadd.f32 0.0, %v1156
      %1158 = vmatmul.f32.gmra.mxu0 %v1031
      %v1159 = vpop.f32.mrf.mxu0
      %v1160 = vadd.f32 0.0, %v1159
      %1161 = vmatmul.f32.gmra.mxu0 %v1109
      %v1162 = vpop.f32.mrf.mxu0
      %v1163 = vadd.f32 0.0, %v1162
      %1164 = vmatmul.f32.gmra.mxu0 %v1111
      %v1165 = vpop.f32.mrf.mxu0
      %v1166 = vadd.f32 0.0, %v1165
      %1167 = vmatmul.f32.gmra.mxu0 %v1113
      %v1168 = vpop.f32.mrf.mxu0
      %v1169 = vadd.f32 0.0, %v1168
      %1170 = vdwg.mxu0
      %v1171 = vadd.f32 %v1089, %v1136
      %v1172 = vadd.f32 %v1090, %v1139
      %v1173 = vadd.f32 %v1091, %v1142
      %v1174 = vadd.f32 %v1092, %v1145
      %v1175 = vadd.f32 %v1093, %v1148
      %v1176 = vadd.f32 %v1094, %v1151
      %v1177 = vadd.f32 %v1095, %v1154
      %v1178 = vadd.f32 %v1096, %v1157
      %v1179 = vadd.f32 %v1097, %v1160
      %v1180 = vadd.f32 %v1098, %v1163
      %v1181 = vadd.f32 %v1099, %v1166
      %v1182 = vadd.f32 %v1100, %v1169
      %s1183 = scalar_lea.vmem %s420, 32
      %v1184 = vld [vmem:[%s1183] sm:$0xf]
      %v1185 = vrot.slane %v453, 2
      %v1186 = vsel %vm983, %v1107, %v1185
      %v1187 = vrot.slane %v454, 2
      %v1188 = vsel %vm983, %v1185, %v1187
      %v1189 = vrot.slane 0.0, 2
      %v1190 = vsel %vm983, %v1187, %v1189
      %v1191 = vsel %vm458, %v1186, 0
      %v1193 = vsel %vm458, %v1188, 0
      %v1195 = vsel %vm458, %v1190, 0
      %v1198 = vsel %vm495, %v1184, 0
      %1200 = vmatpush.msra.mxu0 0.0
      %1201 = vmatpush.msra.mxu0 0.0
      %1202 = vmatpush.msra.mxu0 0.0
      %1203 = vmatpush.msra.mxu0 0.0
      %1204 = vmatpush.msra.mxu0 0.0
      %1205 = vmatpush.msra.mxu0 0.0
      %1206 = vmatpush.msra.mxu0 0.0
      %1207 = vmatpush.msra.mxu0 0.0
      %1208 = vmatpush.msra.mxu0 0.0
      %1209 = vmatpush.msra.mxu0 0.0
      %1210 = vmatpush.msra.mxu0 0.0
      %1211 = vmatpush.msra.mxu0 0.0
      %1212 = vmatpush.msra.mxu0 0.0
      %1213 = vmatpush.msra.mxu0 0.0
      %1214 = vmatpush.msra.mxu0 0.0
      %1215 = vmatpush.msra.mxu0 %v1198
      %1216 = vmatmul.f32.gmra.mxu0 %v1021
      %v1217 = vpop.f32.mrf.mxu0
      %v1218 = vadd.f32 0.0, %v1217
      %1219 = vmatmul.f32.gmra.mxu0 %v1023
      %v1220 = vpop.f32.mrf.mxu0
      %v1221 = vadd.f32 0.0, %v1220
      %1222 = vmatmul.f32.gmra.mxu0 %v1025
      %v1223 = vpop.f32.mrf.mxu0
      %v1224 = vadd.f32 0.0, %v1223
      %1225 = vmatmul.f32.gmra.mxu0 %v1027
      %v1226 = vpop.f32.mrf.mxu0
      %v1227 = vadd.f32 0.0, %v1226
      %1228 = vmatmul.f32.gmra.mxu0 %v1029
      %v1229 = vpop.f32.mrf.mxu0
      %v1230 = vadd.f32 0.0, %v1229
      %1231 = vmatmul.f32.gmra.mxu0 %v1031
      %v1232 = vpop.f32.mrf.mxu0
      %v1233 = vadd.f32 0.0, %v1232
      %1234 = vmatmul.f32.gmra.mxu0 %v1109
      %v1235 = vpop.f32.mrf.mxu0
      %v1236 = vadd.f32 0.0, %v1235
      %1237 = vmatmul.f32.gmra.mxu0 %v1111
      %v1238 = vpop.f32.mrf.mxu0
      %v1239 = vadd.f32 0.0, %v1238
      %1240 = vmatmul.f32.gmra.mxu0 %v1113
      %v1241 = vpop.f32.mrf.mxu0
      %v1242 = vadd.f32 0.0, %v1241
      %1243 = vmatmul.f32.gmra.mxu0 %v1191
      %v1244 = vpop.f32.mrf.mxu0
      %v1245 = vadd.f32 0.0, %v1244
      %1246 = vmatmul.f32.gmra.mxu0 %v1193
      %v1247 = vpop.f32.mrf.mxu0
      %v1248 = vadd.f32 0.0, %v1247
      %1249 = vmatmul.f32.gmra.mxu0 %v1195
      %v1250 = vpop.f32.mrf.mxu0
      %v1251 = vadd.f32 0.0, %v1250
      %1252 = vdwg.mxu0
      %v1253 = vadd.f32 %v1171, %v1218
      %v1254 = vadd.f32 %v1172, %v1221
      %v1255 = vadd.f32 %v1173, %v1224
      %v1256 = vadd.f32 %v1174, %v1227
      %v1257 = vadd.f32 %v1175, %v1230
      %v1258 = vadd.f32 %v1176, %v1233
      %v1259 = vadd.f32 %v1177, %v1236
      %v1260 = vadd.f32 %v1178, %v1239
      %v1261 = vadd.f32 %v1179, %v1242
      %v1262 = vadd.f32 %v1180, %v1245
      %v1263 = vadd.f32 %v1181, %v1248
      %v1264 = vadd.f32 %v1182, %v1251
      %v1265 = vld [vmem:[%s423] sm:$0x1]
      %v1267 = vperm.slane %v1265, 0
      %v1269 = vadd.f32 %v1253, %v1267
      %v1270 = vadd.f32 %v1254, %v1267
      %v1271 = vadd.f32 %v1255, %v1267
      %v1272 = vadd.f32 %v1256, %v1267
      %v1273 = vadd.f32 %v1257, %v1267
      %v1274 = vadd.f32 %v1258, %v1267
      %v1275 = vadd.f32 %v1259, %v1267
      %v1276 = vadd.f32 %v1260, %v1267
      %v1277 = vadd.f32 %v1261, %v1267
      %v1278 = vadd.f32 %v1262, %v1267
      %v1279 = vadd.f32 %v1263, %v1267
      %v1280 = vadd.f32 %v1264, %v1267
      %v1281 = vmax.f32 %v1269, 0.0
      %v1282 = vmax.f32 %v1270, 0.0
      %v1283 = vmax.f32 %v1271, 0.0
      %v1284 = vmax.f32 %v1272, 0.0
      %v1285 = vmax.f32 %v1273, 0.0
      %v1286 = vmax.f32 %v1274, 0.0
      %v1287 = vmax.f32 %v1275, 0.0
      %v1288 = vmax.f32 %v1276, 0.0
      %v1289 = vmax.f32 %v1277, 0.0
      %v1290 = vmax.f32 %v1278, 0.0
      %v1291 = vmax.f32 %v1279, 0.0
      %v1292 = vmax.f32 %v1280, 0.0
      %1293 = vst.msk [vmem:[%s435] sm:$0xff] %vm458, %v1281
      %1294 = vst.msk [vmem:[%s435 + $0x8] sm:$0xff] %vm458, %v1282
      %1295 = vst.msk [vmem:[%s435 + $0x10] sm:$0xff] %vm458, %v1283
      %1296 = vst.msk [vmem:[%s435 + $0x18] sm:$0xff] %vm458, %v1284
      %1297 = vst.msk [vmem:[%s435 + $0x20] sm:$0xff] %vm458, %v1285
      %1298 = vst.msk [vmem:[%s435 + $0x28] sm:$0xff] %vm458, %v1286
      %1299 = vst.msk [vmem:[%s435 + $0x30] sm:$0xff] %vm458, %v1287
      %1300 = vst.msk [vmem:[%s435 + $0x38] sm:$0xff] %vm458, %v1288
      %1301 = vst.msk [vmem:[%s435 + $0x40] sm:$0xff] %vm458, %v1289
      %1302 = vst.msk [vmem:[%s435 + $0x48] sm:$0xff] %vm458, %v1290
      %1303 = vst.msk [vmem:[%s435 + $0x50] sm:$0xff] %vm458, %v1291
      %1304 = vst.msk [vmem:[%s435 + $0x58] sm:$0xff] %vm458, %v1292
      %s1305 = smul.u32 12, %s22
      %p1306 = scmp.lt.s32.totalorder %s21, 1
      %s1307 = scalar_select %p1306, %s21, 1
      %p1308 = scmp.lt.s32.totalorder %s1305, 47
      %s1309 = scalar_select %p1308, %s1305, 47
      %p1310 = scmp.lt.s32.totalorder %s23, 0
      %s1311 = scalar_select %p1310, %s23, 0
      %s1312 = sadd.s32 %s1311, %s1309
      %s1313 = smul.addr %s1307, 48
      %s1314 = sadd.s32 %s1312, %s1313
      %s1315 = smul.addr %s1314, 8
      %s1316 = scalar_lea.vmem %s5, %s1315
      // Predicated region
      $region41: #{tpu_custom_call.1} parent=39 // pred_check
        %p1317 = pneg %p203
      $region42: #{tpu_custom_call.1} parent=39 // pred_check_branch
        %1319 = sbr.rel (%p1317) target = $region44
      $region43: #{tpu_custom_call.1} parent=39 // pred_region
        %s1320 = smul.u32 12, %s22
      $region44: #{tpu_custom_call.1} parent=39 // pred_fallthru
        _
    $region40: #{tpu_custom_call.1} parent=5 // pred_fallthru
      _
    %p1321 = scmp.le.s32.totalorder 2, %s11
    // Predicated region
    $region45: #{tpu_custom_call.1} parent=5 // pred_check
      %p1322 = pneg %p1321
    $region46: #{tpu_custom_call.1} parent=5 // pred_check_branch
      %1324 = sbr.rel (%p1322) target = $region48
    $region47: #{tpu_custom_call.1} parent=5 // pred_region
      %s1325 = ssub.s32 %s11, 2
      // Predicated region
      $region49: #{tpu_custom_call.1} parent=47 // pred_check
        %p1326 = pneg %p209
      $region50: #{tpu_custom_call.1} parent=47 // pred_check_branch
        %1328 = sbr.rel (%p1326) target = $region52
      $region51: #{tpu_custom_call.1} parent=47 // pred_region
        %s1329 = smul.u32 12, %s25
        %p1330 = scmp.lt.s32.totalorder %s24, 1
        %s1331 = scalar_select %p1330, %s24, 1
        %p1332 = scmp.lt.s32.totalorder %s1329, 47
        %s1333 = scalar_select %p1332, %s1329, 47
        %p1334 = scmp.lt.s32.totalorder %s26, 0
        %s1335 = scalar_select %p1334, %s26, 0
        %s1336 = sadd.s32 %s1335, %s1333
        %s1337 = smul.addr %s1331, 48
        %s1338 = sadd.s32 %s1336, %s1337
        %s1339 = smul.addr %s1338, 8
        %s1340 = scalar_lea.vmem %s5, %s1339
      $region52: #{tpu_custom_call.1} parent=47 // pred_fallthru
        _
    $region48: #{tpu_custom_call.1} parent=5 // pred_fallthru
      _
  $region6: #{tpu_custom_call.1} parent=0 // loop_footer
    %s15 = sadd.s32 1, %s11
  $region7: #{tpu_custom_call.1} parent=0 // loop_footer_branch
    %10 = sbr.rel target = $region3
  $region8: #{tpu_custom_call.1} parent=0 // loop_exit
    _

</llo_original>
